<compile_context>
chip_gen: v7x
topology: tpu7x:2x2x1
jax: 0.10.0
libtpu: 0.0.40
codegen_flags: <defaults>
</compile_context>

<pallas_src>
import jax
import jax.numpy as jnp
from jax.experimental import pallas as pl
from jax.experimental.pallas import tpu as pltpu


# --------------------------- fused Pallas kernel ------------------------------
def _conv1x1_bn_relu_kernel(x_ref, w_ref, b_ref, o_ref):
    # x_ref : (1, Cin, THW) f32  NCHW-native activation slab (spatial on lanes)
    # w_ref : (Cout, Cin)   bf16 1x1 conv weight with BN scale folded in
    # b_ref : (Cout, 1)     f32  folded BN bias
    # o_ref : (1, Cout, THW) f32
    x = x_ref[0].astype(jnp.bfloat16)                      # (Cin, THW) -> bf16 MXU feed
    acc = jnp.dot(w_ref[...], x,
                  preferred_element_type=jnp.float32)      # (Cout, THW), single MXU pass
    o_ref[0] = jnp.maximum(acc + b_ref[...], 0.0).astype(o_ref.dtype)


def _choose_spatial_tile(hw, n_images, cin, cout,
                         vmem_budget=24 * 1024 * 1024):
    """Largest lane-dense (multiple-of-128) divisor of H*W that fits VMEM and
    still yields >= 4 total grid steps (>= 2 per core on v7x megacore)."""
    def fits(t):
        # 2x double-buffered x tile + 2x double-buffered out tile + weight + bias
        need = (2 * cin * t * 4) + (2 * cout * t * 4) + cout * cin * 2 + cout * 4
        return need <= vmem_budget

    candidates = [t for t in (4096, 2048, 1024, 512, 256, 128)
                  if hw % t == 0 and fits(t)]
    for t in candidates:                       # biggest tile with enough steps
        if n_images * (hw // t) >= 4:
            return t
    if candidates:                             # small problem: smallest dense tile
        return candidates[-1]
    return hw                                  # fallback: full (unaligned) row


def conv1x1_bn_relu(x_nchw, w_oihw, gamma, beta, running_mean, running_var,
                    eps=1e-5):
    """relu(batchnorm(conv1x1(x))) with BN in inference mode (folded affine)."""
    N, Cin, H, W = x_nchw.shape
    Cout = w_oihw.shape[0]
    HW = H * W

    # Fold BN (running stats) into the conv weight + a per-channel bias.
    scale = gamma / jnp.sqrt(running_var + eps)                     # (Cout,)
    bias = (beta - running_mean * scale).astype(jnp.float32)        # (Cout,)
    w = (w_oihw.reshape(Cout, Cin) * scale[:, None]).astype(jnp.bfloat16)

    # Metadata-only reshape; stays NCHW-native (no HBM transpose, no pad copy).
    x = x_nchw.reshape(N, Cin, HW)

    THW = _choose_spatial_tile(HW, N, Cin, Cout)
    grid = (N, HW // THW)

    out = pl.pallas_call(
        _conv1x1_bn_relu_kernel,
        out_shape=jax.ShapeDtypeStruct((N, Cout, HW), jnp.float32),
        grid_spec=pltpu.PrefetchScalarGridSpec(
            num_scalar_prefetch=0,
            grid=grid,
            in_specs=[
                pl.BlockSpec((1, Cin, THW), lambda n, j: (n, 0, j)),
                pl.BlockSpec((Cout, Cin), lambda n, j: (0, 0)),
                pl.BlockSpec((Cout, 1), lambda n, j: (0, 0)),
            ],
            out_specs=pl.BlockSpec((1, Cout, THW), lambda n, j: (n, 0, j)),
        ),
        compiler_params=pltpu.CompilerParams(
            dimension_semantics=("parallel", "parallel")),
    )(x, w, bias.reshape(Cout, 1))

    return out.reshape(N, Cout, H, W)


# --------------------------- pure-JAX reference -------------------------------
def ref_conv1x1_bn_relu(x_nchw, w_oihw, gamma, beta, running_mean, running_var,
                        eps=1e-5):
    Cout, Cin = w_oihw.shape[0], w_oihw.shape[1]
    scale = gamma / jnp.sqrt(running_var + eps)
    bias = beta - running_mean * scale
    w = w_oihw.reshape(Cout, Cin)
    y = jnp.einsum('oc,nchw->nohw', w, x_nchw.astype(jnp.float32))
    y = y * scale[None, :, None, None] + bias[None, :, None, None]
    return jnp.maximum(y, 0.0)


# ------------------------------------ main -------------------------------------
if __name__ == "__main__":
    key = jax.random.PRNGKey(0)
    kx, kw, kg, kb, km, kv = jax.random.split(key, 6)

    # Small shapes consistent with the module: (N, Cin, H, W) and Cout.
    N, Cin, H, W = 2, 4, 16, 16
    Cout = 32

    x = jax.random.normal(kx, (N, Cin, H, W), jnp.float32)
    w = jax.random.normal(kw, (Cout, Cin, 1, 1), jnp.float32) / (Cin ** 0.5)
    gamma = 1.0 + 0.1 * jax.random.normal(kg, (Cout,), jnp.float32)
    beta = 0.1 * jax.random.normal(kb, (Cout,), jnp.float32)
    running_mean = 0.1 * jax.random.normal(km, (Cout,), jnp.float32)
    running_var = 1.0 + 0.5 * jax.random.uniform(kv, (Cout,), jnp.float32)
    # TODO(synk): nn.BatchNorm2d training-mode batch statistics are not
    # reproduced; BN is evaluated in inference mode with folded running stats.

    out = jax.jit(conv1x1_bn_relu)(x, w, gamma, beta, running_mean, running_var)
    out = jax.block_until_ready(out)
    assert out.shape == (N, Cout, H, W), out.shape
    assert bool(jnp.all(jnp.isfinite(out)))

    ref = jax.block_until_ready(
        jax.jit(ref_conv1x1_bn_relu)(x, w, gamma, beta, running_mean,
                                     running_var))
    err = float(jnp.max(jnp.abs(out - ref)))
    tol = 2e-2 * (float(jnp.max(jnp.abs(ref))) + 1.0)
    assert err <= tol, f"mismatch vs reference: max_abs_err={err}, tol={tol}"

    print("KERNEL_OK")
</pallas_src>

<mosaic_0001>
module attributes {stable_mosaic.version = 11 : i64} {
  func.func @_conv1x1_bn_relu_kernel(%arg0: i32, %arg1: i32, %arg2: memref<1x4x128xf32, #tpu.memory_space<vmem>>, %arg3: memref<32x4xbf16, #tpu.memory_space<vmem>>, %arg4: memref<32x1xf32, #tpu.memory_space<vmem>>, %arg5: memref<1x32x128xf32, #tpu.memory_space<vmem>>) attributes {dimension_semantics = [#tpu.dimension_semantics<parallel>, #tpu.dimension_semantics<parallel>], iteration_bounds = array<i64: 2, 2>, scalar_prefetch = 0 : i64, scratch_operands = 0 : i64, tpu.core_type = #tpu.core_type<tc>, window_params = [{transform_indices = @transform_0, window_bounds = array<i64: 1, 4, 128>}, {pipeline_mode = #tpu.pipeline_mode<synchronous>, transform_indices = @transform_1, window_bounds = array<i64: 32, 4>}, {pipeline_mode = #tpu.pipeline_mode<synchronous>, transform_indices = @transform_2, window_bounds = array<i64: 32, 1>}, {transform_indices = @transform_3, window_bounds = array<i64: 1, 32, 128>}]} {
    %c0 = arith.constant 0 : index
    %c0_0 = arith.constant 0 : index
    %c0_1 = arith.constant 0 : index
    %0 = vector.load %arg2[%c0, %c0_0, %c0_1] : memref<1x4x128xf32, #tpu.memory_space<vmem>>, vector<1x4x128xf32>
    %1 = vector.shape_cast %0 : vector<1x4x128xf32> to vector<4x128xf32>
    %2 = arith.truncf %1 : vector<4x128xf32> to vector<4x128xbf16>
    %c0_2 = arith.constant 0 : index
    %c0_3 = arith.constant 0 : index
    %3 = vector.load %arg3[%c0_2, %c0_3] : memref<32x4xbf16, #tpu.memory_space<vmem>>, vector<32x4xbf16>
    %cst = arith.constant dense<0.000000e+00> : vector<32x128xf32>
    %4 = tpu.matmul %3, %2, %cst {dimension_numbers = #tpu.dot_dimension_numbers<[1], [0], [0], [1], [0, 0, 1, 1], [], []>} : vector<32x4xbf16>, vector<4x128xbf16>, vector<32x128xf32> -> vector<32x128xf32>
    %c0_4 = arith.constant 0 : index
    %c0_5 = arith.constant 0 : index
    %5 = vector.load %arg4[%c0_4, %c0_5] : memref<32x1xf32, #tpu.memory_space<vmem>>, vector<32x1xf32>
    %6 = vector.broadcast %5 : vector<32x1xf32> to vector<32x128xf32>
    %7 = arith.addf %4, %6 : vector<32x128xf32>
    %cst_6 = arith.constant 0.000000e+00 : f32
    %8 = vector.broadcast %cst_6 : f32 to vector<32x128xf32>
    %9 = arith.maximumf %7, %8 : vector<32x128xf32>
    %c0_7 = arith.constant 0 : index
    %c0_8 = arith.constant 0 : index
    %c0_9 = arith.constant 0 : index
    %10 = vector.load %arg5[%c0_7, %c0_8, %c0_9] : memref<1x32x128xf32, #tpu.memory_space<vmem>>, vector<1x32x128xf32>
    %11 = vector.shape_cast %10 : vector<1x32x128xf32> to vector<32x128xf32>
    %12 = vector.shape_cast %9 : vector<32x128xf32> to vector<1x32x128xf32>
    tpu.vector_store %arg5[%c0_7, %c0_8, %c0_9], %12 {strides = array<i32>} : memref<1x32x128xf32, #tpu.memory_space<vmem>>, vector<1x32x128xf32>,
    return
  }
  func.func @transform_0(%arg0: i32, %arg1: i32) -> (i32, i32, i32) {
    %c0_i32 = arith.constant 0 : i32
    %c0_i32_0 = arith.constant 0 : i32
    return %arg0, %c0_i32, %arg1 : i32, i32, i32
  }
  func.func @transform_1(%arg0: i32, %arg1: i32) -> (i32, i32) {
    %c0_i32 = arith.constant 0 : i32
    %c0_i32_0 = arith.constant 0 : i32
    %c0_i32_1 = arith.constant 0 : i32
    return %c0_i32, %c0_i32_0 : i32, i32
  }
  func.func @transform_2(%arg0: i32, %arg1: i32) -> (i32, i32) {
    %c0_i32 = arith.constant 0 : i32
    %c0_i32_0 = arith.constant 0 : i32
    %c0_i32_1 = arith.constant 0 : i32
    return %c0_i32, %c0_i32_0 : i32, i32
  }
  func.func @transform_3(%arg0: i32, %arg1: i32) -> (i32, i32, i32) {
    %c0_i32 = arith.constant 0 : i32
    %c0_i32_0 = arith.constant 0 : i32
    return %arg0, %c0_i32, %arg1 : i32, i32, i32
  }
}

</mosaic_0001>

<llo_original>
// kernel: conv1x1_bn_relu.1
$region0: #{conv1x1_bn_relu.1}
  #allocation0 [shape = 'u32[]', space=smem, size = 0x4, offset = 0x4, fixed_abs, tag = 'smem constant byte address 0x4 - core index']
  #allocation1 [shape = 'u32[144,128]{1,0:T(1,128)}', space=vmem, size = 0x12000, scoped, tag = 'internal scratch']
  %s0 = inlined_call_operand.vmem [shape: f32[2,4,256], index: 0, kind: input, shape index: {}]
  %s1 = inlined_call_operand.vmem [shape: bf16[32,4], index: 1, kind: input, shape index: {}]
  %s2 = inlined_call_operand.vmem [shape: f32[32,1], index: 2, kind: input, shape index: {}]
  %s3 = inlined_call_operand.vmem [shape: f32[2,32,256], index: 3, kind: output, shape index: {}]
  %s4 = sld [smem:[#allocation0]]
  $region79: #{conv1x1_bn_relu.1} parent=0
    _
  %s6 = ssub.s32 1, %s4
  %s7 = scalar_select 0, %s6, %s4
  $region1: #{conv1x1_bn_relu.1} parent=0
    #allocation2 [shape = 'u8[32768]{0}', space=vmem, size = 0x8000, scoped, tag = 'output window, operand 0']
    loop: start=0, step=1, limit=6
    $region2: #{conv1x1_bn_relu.1} parent=1 // loop_pre_header
      _
    $region3: #{conv1x1_bn_relu.1} parent=1 // loop_header
      %s9 = sphi 0, %s13
      %p10 = scmp.ge.s32.totalorder %s9, 6
      %s16 = sphi 0, %s28
      %s17 = sphi 0, %s24
      %s18 = sphi 0, %s16
      %s19 = sphi 0, %s17
      %s20 = sphi 0, %s18
      %s21 = sphi 0, %s19
      %s33 = sphi 0, %s35
      %s36 = sphi 0, %s33
      %s37 = sphi 0, %s36
      %s53 = sphi 0, %s37
      %s57 = sphi 0, %s57
      %s59 = sphi 0, %s57
      %s60 = sphi 0, %s59
      %s74 = sphi 0, %s60
      %s78 = sphi 0, %s78
      %s80 = sphi 0, %s78
      %s81 = sphi 0, %s80
      %s95 = sphi 0, %s81
      %s103 = sphi 0, %s105
      %s106 = sphi 0, %s103
      %s107 = sphi 0, %s106
      %s123 = sphi 0, %s107
    $region4: #{conv1x1_bn_relu.1} parent=1 // loop_header_branch
      %12 = sbr.rel (%p10) target = $region8
    $region5: #{conv1x1_bn_relu.1} parent=1 // loop_body
      %s14 = ssub.s32 %s9, 1
      %s15 = ssub.s32 %s9, 2
      %s22 = sadd.s32 1, %s17
      %p23 = scmp.ge.s32.totalorder %s22, 2
      %s24 = scalar_select %p23, 0, %s22
      %s25 = sadd.s32 1, %s16
      %s26 = scalar_select %p23, %s25, %s16
      %p27 = scmp.ge.s32.totalorder %s26, 2
      %s28 = scalar_select %p27, 0, %s26
      %s29 = ssub.s32 %s16, %s28
      %s30 = ssub.s32 %s17, %s24
      %s31 = sor.u32 %s29, %s30
      %p32 = scmp.eq.s32.totalorder %s31, 0
      %s34 = sadd.s32 %s33, 1
      %s35 = scalar_select %p32, %s33, %s34
      %p38 = pneg %p32
      %p39 = scmp.eq.s32.totalorder %s9, 3
      %p40 = por %p38, %p39
      %p41 = scmp.ne.s32.totalorder %s33, %s36
      %p42 = scmp.eq.s32.totalorder %s9, 0
      %p43 = por %p41, %p42
      %p44 = scmp.ne.s32.totalorder %s33, %s36
      %p45 = scmp.eq.s32.totalorder %s14, 3
      %p46 = por %p44, %p45
      %p47 = scmp.ne.s32.totalorder %s36, %s37
      %p48 = scmp.eq.s32.totalorder %s14, 0
      %p49 = por %p47, %p48
      %p50 = scmp.ne.s32.totalorder %s36, %s37
      %p51 = scmp.eq.s32.totalorder %s15, 3
      %p52 = por %p50, %p51
      %p54 = scmp.ne.s32.totalorder %s37, %s53
      %p55 = scmp.eq.s32.totalorder %s15, 0
      %p56 = por %p54, %p55
      %s58 = sadd.s32 %s57, 1
      %p61 = scmp.eq.s32.totalorder %s9, 3
      %p62 = scmp.ne.s32.totalorder %s57, %s59
      %p63 = scmp.eq.s32.totalorder %s9, 0
      %p64 = por %p62, %p63
      %p65 = scmp.ne.s32.totalorder %s57, %s59
      %p66 = scmp.eq.s32.totalorder %s14, 3
      %p67 = por %p65, %p66
      %p68 = scmp.ne.s32.totalorder %s59, %s60
      %p69 = scmp.eq.s32.totalorder %s14, 0
      %p70 = por %p68, %p69
      %p71 = scmp.ne.s32.totalorder %s59, %s60
      %p72 = scmp.eq.s32.totalorder %s15, 3
      %p73 = por %p71, %p72
      %p75 = scmp.ne.s32.totalorder %s60, %s74
      %p76 = scmp.eq.s32.totalorder %s15, 0
      %p77 = por %p75, %p76
      %s79 = sadd.s32 %s78, 1
      %p82 = scmp.eq.s32.totalorder %s9, 3
      %p83 = scmp.ne.s32.totalorder %s78, %s80
      %p84 = scmp.eq.s32.totalorder %s9, 0
      %p85 = por %p83, %p84
      %p86 = scmp.ne.s32.totalorder %s78, %s80
      %p87 = scmp.eq.s32.totalorder %s14, 3
      %p88 = por %p86, %p87
      %p89 = scmp.ne.s32.totalorder %s80, %s81
      %p90 = scmp.eq.s32.totalorder %s14, 0
      %p91 = por %p89, %p90
      %p92 = scmp.ne.s32.totalorder %s80, %s81
      %p93 = scmp.eq.s32.totalorder %s15, 3
      %p94 = por %p92, %p93
      %p96 = scmp.ne.s32.totalorder %s81, %s95
      %p97 = scmp.eq.s32.totalorder %s15, 0
      %p98 = por %p96, %p97
      %s99 = ssub.s32 %s16, %s28
      %s100 = ssub.s32 %s17, %s24
      %s101 = sor.u32 %s99, %s100
      %p102 = scmp.eq.s32.totalorder %s101, 0
      %s104 = sadd.s32 %s103, 1
      %s105 = scalar_select %p102, %s103, %s104
      %p108 = pneg %p102
      %p109 = scmp.eq.s32.totalorder %s9, 3
      %p110 = por %p108, %p109
      %p111 = scmp.ne.s32.totalorder %s103, %s106
      %p112 = scmp.eq.s32.totalorder %s9, 0
      %p113 = por %p111, %p112
      %p114 = scmp.ne.s32.totalorder %s103, %s106
      %p115 = scmp.eq.s32.totalorder %s14, 3
      %p116 = por %p114, %p115
      %p117 = scmp.ne.s32.totalorder %s106, %s107
      %p118 = scmp.eq.s32.totalorder %s14, 0
      %p119 = por %p117, %p118
      %p120 = scmp.ne.s32.totalorder %s106, %s107
      %p121 = scmp.eq.s32.totalorder %s15, 3
      %p122 = por %p120, %p121
      %p124 = scmp.ne.s32.totalorder %s107, %s123
      %p125 = scmp.eq.s32.totalorder %s15, 0
      %p126 = por %p124, %p125
      %p127 = scmp.le.s32.totalorder 1, %s9
      %p128 = scmp.lt.s32.totalorder %s9, 5
      %p129 = pnand %p127, %p128
      %p130 = pneg %p129
      // Predicated region
      $region9: #{conv1x1_bn_relu.1} parent=5 // pred_check
        _
      $region10: #{conv1x1_bn_relu.1} parent=5 // pred_check_branch
        %132 = sbr.rel (%p129) target = $region12
      $region11: #{conv1x1_bn_relu.1} parent=5 // pred_region
        %s133 = ssub.s32 %s9, 1
        // Predicated region
        $region13: #{conv1x1_bn_relu.1} parent=11 // pred_check
          %p134 = pneg %p70
        $region14: #{conv1x1_bn_relu.1} parent=11 // pred_check_branch
          %136 = sbr.rel (%p134) target = $region16
        $region15: #{conv1x1_bn_relu.1} parent=11 // pred_region
          _
        $region16: #{conv1x1_bn_relu.1} parent=11 // pred_fallthru
          _
        // Predicated region
        $region17: #{conv1x1_bn_relu.1} parent=11 // pred_check
          %p137 = pneg %p91
        $region18: #{conv1x1_bn_relu.1} parent=11 // pred_check_branch
          %139 = sbr.rel (%p137) target = $region20
        $region19: #{conv1x1_bn_relu.1} parent=11 // pred_region
          _
        $region20: #{conv1x1_bn_relu.1} parent=11 // pred_fallthru
          _
      $region12: #{conv1x1_bn_relu.1} parent=5 // pred_fallthru
        _
      %p140 = scmp.lt.s32.totalorder %s9, 4
      // Predicated region
      $region21: #{conv1x1_bn_relu.1} parent=5 // pred_check
        %p141 = pneg %p140
      $region22: #{conv1x1_bn_relu.1} parent=5 // pred_check_branch
        %143 = sbr.rel (%p141) target = $region24
      $region23: #{conv1x1_bn_relu.1} parent=5 // pred_region
        // Predicated region
        $region25: #{conv1x1_bn_relu.1} parent=23 // pred_check
          %p144 = pneg %p43
        $region26: #{conv1x1_bn_relu.1} parent=23 // pred_check_branch
          %146 = sbr.rel (%p144) target = $region28
        $region27: #{conv1x1_bn_relu.1} parent=23 // pred_region
          %p147 = scmp.lt.s32.totalorder %s16, 1
          %s148 = scalar_select %p147, %s16, 1
          %p149 = scmp.lt.s32.totalorder %s17, 1
          %s150 = scalar_select %p149, %s17, 1
          %s151 = smul.addr %s148, 2
          %s152 = sadd.s32 %s150, %s151
          %s153 = smul.addr %s152, 4
          %s154 = scalar_lea.vmem %s0, %s153
        $region28: #{conv1x1_bn_relu.1} parent=23 // pred_fallthru
          _
      $region24: #{conv1x1_bn_relu.1} parent=5 // pred_fallthru
        _
      %p155 = scmp.le.s32.totalorder 1, %s9
      %p156 = scmp.lt.s32.totalorder %s9, 5
      %p157 = pnand %p155, %p156
      %p158 = pneg %p157
      // Predicated region
      $region29: #{conv1x1_bn_relu.1} parent=5 // pred_check
        _
      $region30: #{conv1x1_bn_relu.1} parent=5 // pred_check_branch
        %160 = sbr.rel (%p157) target = $region32
      $region31: #{conv1x1_bn_relu.1} parent=5 // pred_region
        %s161 = ssub.s32 %s9, 1
        %p162 = scmp.lt.s32.totalorder %s18, 1
        %s163 = scalar_select %p162, %s18, 1
        %p164 = scmp.lt.s32.totalorder %s19, 1
        %s165 = scalar_select %p164, %s19, 1
        %s166 = smul.addr %s163, 2
        %s167 = sadd.s32 %s165, %s166
        %s168 = smul.addr %s167, 4
        %s169 = scalar_lea.vmem %s0, %s168
        %p170 = pneg %p49
        %p171 = pneg %p46
        %p172 = pneg %p70
        %p173 = pneg %p67
        %p174 = pneg %p91
        %p175 = pneg %p88
        %p176 = pneg %p119
        %p177 = pneg %p116
        %s178 = sand.u32 %s106, 1
        %s179 = sand.u32 %s106, 1
        %s180 = smul.addr %s179, 32
        %s181 = scalar_lea.vmem [#allocation2], %s180
        %p182 = scmp.lt.s32.totalorder %s18, 1
        %s183 = scalar_select %p182, %s18, 1
        %p184 = scmp.lt.s32.totalorder %s19, 1
        %s185 = scalar_select %p184, %s19, 1
        %s186 = smul.addr %s183, 2
        %s187 = sadd.s32 %s185, %s186
        %s188 = smul.addr %s187, 4
        %s189 = scalar_lea.vmem %s0, %s188
        %v191 = vld [vmem:[%s189] sm:$0xf]
        %v192 = vpack.c.bf16 %v191, %v191
        %v193 = vld [vmem:[%s1] sm:$0xf]
        %v194 = vld [vmem:[%s1 + $0x4] sm:$0xf]
        %v195 = vld [vmem:[%s1 + $0x8] sm:$0xf]
        %v196 = vld [vmem:[%s1 + $0xc] sm:$0xf]
        %v197 = vld [vmem:[%s2] sm:$0xff]
        %v198 = vld [vmem:[%s2 + $0x8] sm:$0xff]
        %v199 = vld [vmem:[%s2 + $0x10] sm:$0xff]
        %v200 = vld [vmem:[%s2 + $0x18] sm:$0xff]
        %202 = vset.pattern.permute.xlu0 0
        %203 = vperm.xlu0 %202, %v197
        %v204 = vpop.permute.xlu0 %203
        %207 = vset.pattern.permute.xlu0 0
        %208 = vperm.xlu0 %207, %v198
        %v209 = vpop.permute.xlu0 %208
        %212 = vset.pattern.permute.xlu0 0
        %213 = vperm.xlu0 %212, %v199
        %v214 = vpop.permute.xlu0 %213
        %217 = vset.pattern.permute.xlu0 0
        %218 = vperm.xlu0 %217, %v200
        %v219 = vpop.permute.xlu0 %218
        %v225 = vunpack.c.l.b16 %v193
        %v226 = vunpack.c.l.b16 %v194
        %v227 = vunpack.c.l.b16 %v195
        %v228 = vunpack.c.l.b16 %v196
        %v229 = vpack.c.b16 %v226, %v225
        %v230 = vpack.c.b16 %v228, %v227
        %vm231 = vcmask 31744
        %v233 = vsel %vm231, %v229, 0
        %v236 = vsel %vm231, %v230, 0
        %vm238 = vcmask 1041408
        %v240 = vsel %vm238, %v192, 0
        %242 = vmatprep.subr.bf16.mxu0 0
        %243 = vmatpush1.bf16.msra.mxu0 %v240
        %244 = vmatprep.subr.bf16.mxu0 0
        %245 = vmatpush1.bf16.msra.mxu0 0
        %246 = vmatprep.subr.bf16.mxu0 0
        %247 = vmatpush1.bf16.msra.mxu0 0
        %248 = vmatprep.subr.bf16.mxu0 0
        %249 = vmatpush1.bf16.msra.mxu0 0
        %250 = vmatprep.subr.bf16.mxu0 0
        %251 = vmatpush1.bf16.msra.mxu0 0
        %252 = vmatprep.subr.bf16.mxu0 0
        %253 = vmatpush1.bf16.msra.mxu0 0
        %254 = vmatprep.subr.bf16.mxu0 0
        %255 = vmatpush1.bf16.msra.mxu0 0
        %256 = vmatprep.subr.bf16.mxu0 0
        %257 = vmatpush1.bf16.msra.mxu0 0
        %258 = vmatprep.subr.bf16.mxu0 0
        %259 = vmatpush1.bf16.msra.mxu0 0
        %260 = vmatprep.subr.bf16.mxu0 0
        %261 = vmatpush1.bf16.msra.mxu0 0
        %262 = vmatprep.subr.bf16.mxu0 0
        %263 = vmatpush1.bf16.msra.mxu0 0
        %264 = vmatprep.subr.bf16.mxu0 0
        %265 = vmatpush1.bf16.msra.mxu0 0
        %266 = vmatprep.subr.bf16.mxu0 0
        %267 = vmatpush1.bf16.msra.mxu0 0
        %268 = vmatprep.subr.bf16.mxu0 0
        %269 = vmatpush1.bf16.msra.mxu0 0
        %270 = vmatprep.subr.bf16.mxu0 0
        %271 = vmatpush1.bf16.msra.mxu0 0
        %272 = vmatprep.subr.bf16.mxu0 0
        %273 = vmatpush1.bf16.msra.mxu0 0
        %274 = vmatprep.mubr.bf16.mxu0 0
        %275 = vmatmul.mubr.bf16.gmra.mrb[0].mxu0 %v233
        %v276 = vpop.f32.mrb[0].mxu0
        %v277 = vadd.f32 %v204, %v276
        %v278 = vpop.f32.mrb[0].mxu0
        %v279 = vpop.f32.mrb[0].mxu0
        %v280 = vadd.f32 %v209, %v279
        %v281 = vpop.f32.mrb[0].mxu0
        %282 = vmatprep.mubr.bf16.mxu0 0
        %283 = vmatmul.mubr.bf16.gmra.mrb[0].mxu0 %v236
        %v284 = vpop.f32.mrb[0].mxu0
        %v285 = vadd.f32 %v214, %v284
        %v286 = vpop.f32.mrb[0].mxu0
        %v287 = vpop.f32.mrb[0].mxu0
        %v288 = vadd.f32 %v219, %v287
        %v289 = vpop.f32.mrb[0].mxu0
        %290 = vdwg.mxu0
        %v291 = vmax.f32 %v277, 0.0
        %v292 = vmax.f32 %v280, 0.0
        %v293 = vmax.f32 %v285, 0.0
        %v294 = vmax.f32 %v288, 0.0
        %295 = vst [vmem:[%s181] sm:$0xff] %v291
        %296 = vst [vmem:[%s181 + $0x8] sm:$0xff] %v292
        %297 = vst [vmem:[%s181 + $0x10] sm:$0xff] %v293
        %298 = vst [vmem:[%s181 + $0x18] sm:$0xff] %v294
        %s299 = sand.u32 %s106, 1
        %s300 = sand.u32 %s106, 1
        %s301 = smul.addr %s300, 32
        %s302 = scalar_lea.vmem [#allocation2], %s301
        // Predicated region
        $region33: #{conv1x1_bn_relu.1} parent=31 // pred_check
          %p303 = pneg %p116
        $region34: #{conv1x1_bn_relu.1} parent=31 // pred_check_branch
          %305 = sbr.rel (%p303) target = $region36
        $region35: #{conv1x1_bn_relu.1} parent=31 // pred_region
          %s306 = smul.addr %s18, 8
          %s307 = sadd.s32 %s19, %s306
          %s308 = smul.addr %s307, 8
          %s309 = scalar_lea.vmem %s3, %s308
          // Predicated region
          $region37: #{conv1x1_bn_relu.1} parent=35 // pred_check
            _
          $region38: #{conv1x1_bn_relu.1} parent=35 // pred_check_branch
            %311 = sbr.rel (0) target = $region40
          $region39: #{conv1x1_bn_relu.1} parent=35 // pred_region
            // Predicated region
            $region41: #{conv1x1_bn_relu.1} parent=39 // pred_check
              _
            $region42: #{conv1x1_bn_relu.1} parent=39 // pred_check_branch
              %313 = sbr.rel (0) target = $region44
            $region43: #{conv1x1_bn_relu.1} parent=39 // pred_region
              // Predicated region
              $region56: #{conv1x1_bn_relu.1} parent=43 // pred_check
                _
              $region57: #{conv1x1_bn_relu.1} parent=43 // pred_check_branch
                %334 = sbr.rel (0) target = $region59
              $region58: #{conv1x1_bn_relu.1} parent=43 // pred_region
                loop: start=0, step=1, limit=1
                $region60: #{conv1x1_bn_relu.1} parent=58 // loop_pre_header
                  _
                $region61: #{conv1x1_bn_relu.1} parent=58 // loop_header
                  %s336 = sphi 0, %s340
                  %p337 = scmp.ge.s32.totalorder %s336, 1
                  %s341 = sphi %s302, %s302
                  %s342 = sphi %s309, %s309
                $region62: #{conv1x1_bn_relu.1} parent=58 // loop_header_branch
                  %339 = sbr.rel (%p337) target = $region66
                $region63: #{conv1x1_bn_relu.1} parent=58 // loop_body
                  %v343 = vld [vmem:[%s341] sm:$0xff]
                  %344 = vst [vmem:[%s342] sm:$0xff] %v343
                  %v345 = vld [vmem:[%s341 + $0x8] sm:$0xff]
                  %346 = vst [vmem:[%s342 + $0x10] sm:$0xff] %v345
                  %v347 = vld [vmem:[%s341 + $0x10] sm:$0xff]
                  %348 = vst [vmem:[%s342 + $0x20] sm:$0xff] %v347
                  %v349 = vld [vmem:[%s341 + $0x18] sm:$0xff]
                  %350 = vst [vmem:[%s342 + $0x30] sm:$0xff] %v349
                $region64: #{conv1x1_bn_relu.1} parent=58 // loop_footer
                  %s340 = sadd.s32 1, %s336
                $region65: #{conv1x1_bn_relu.1} parent=58 // loop_footer_branch
                  %335 = sbr.rel target = $region61
                $region66: #{conv1x1_bn_relu.1} parent=58 // loop_exit
                  _
              $region59: #{conv1x1_bn_relu.1} parent=43 // pred_fallthru
                _
              // Predicated region
              $region67: #{conv1x1_bn_relu.1} parent=43 // pred_check
                _
              $region68: #{conv1x1_bn_relu.1} parent=43 // pred_check_branch
                %352 = sbr.rel target = $region70
              $region69: #{conv1x1_bn_relu.1} parent=43 // pred_region
                _
              $region70: #{conv1x1_bn_relu.1} parent=43 // pred_fallthru
                _
            $region44: #{conv1x1_bn_relu.1} parent=39 // pred_fallthru
              _
            // Predicated region
            $region45: #{conv1x1_bn_relu.1} parent=39 // pred_check
              _
            $region46: #{conv1x1_bn_relu.1} parent=39 // pred_check_branch
              %315 = sbr.rel target = $region48
            $region47: #{conv1x1_bn_relu.1} parent=39 // pred_region
              loop: start=0, step=1, limit=1
              $region49: #{conv1x1_bn_relu.1} parent=47 // loop_pre_header
                _
              $region50: #{conv1x1_bn_relu.1} parent=47 // loop_header
                %s318 = sphi 0, %s322
                %p319 = scmp.ge.s32.totalorder %s318, 1
                %s323 = sphi %s302, %s302
                %s324 = sphi %s309, %s309
              $region51: #{conv1x1_bn_relu.1} parent=47 // loop_header_branch
                %321 = sbr.rel (%p319) target = $region55
              $region52: #{conv1x1_bn_relu.1} parent=47 // loop_body
                %v325 = vld [vmem:[%s323] sm:$0xff]
                %326 = vst [vmem:[%s324] sm:$0xff] %v325
                %v327 = vld [vmem:[%s323 + $0x8] sm:$0xff]
                %328 = vst [vmem:[%s324 + $0x10] sm:$0xff] %v327
                %v329 = vld [vmem:[%s323 + $0x10] sm:$0xff]
                %330 = vst [vmem:[%s324 + $0x20] sm:$0xff] %v329
                %v331 = vld [vmem:[%s323 + $0x18] sm:$0xff]
                %332 = vst [vmem:[%s324 + $0x30] sm:$0xff] %v331
              $region53: #{conv1x1_bn_relu.1} parent=47 // loop_footer
                %s322 = sadd.s32 1, %s318
              $region54: #{conv1x1_bn_relu.1} parent=47 // loop_footer_branch
                %317 = sbr.rel target = $region50
              $region55: #{conv1x1_bn_relu.1} parent=47 // loop_exit
                _
            $region48: #{conv1x1_bn_relu.1} parent=39 // pred_fallthru
              _
          $region40: #{conv1x1_bn_relu.1} parent=35 // pred_fallthru
            _
          %353 = vnop
        $region36: #{conv1x1_bn_relu.1} parent=31 // pred_fallthru
          _
      $region32: #{conv1x1_bn_relu.1} parent=5 // pred_fallthru
        _
      %p354 = scmp.le.s32.totalorder 2, %s9
      // Predicated region
      $region71: #{conv1x1_bn_relu.1} parent=5 // pred_check
        %p355 = pneg %p354
      $region72: #{conv1x1_bn_relu.1} parent=5 // pred_check_branch
        %357 = sbr.rel (%p355) target = $region74
      $region73: #{conv1x1_bn_relu.1} parent=5 // pred_region
        %s358 = ssub.s32 %s9, 2
        // Predicated region
        $region75: #{conv1x1_bn_relu.1} parent=73 // pred_check
          %p359 = pneg %p122
        $region76: #{conv1x1_bn_relu.1} parent=73 // pred_check_branch
          %361 = sbr.rel (%p359) target = $region78
        $region77: #{conv1x1_bn_relu.1} parent=73 // pred_region
          %s362 = sand.u32 %s107, 1
          %s363 = sand.u32 %s107, 1
          %s364 = smul.addr %s363, 32
          %s365 = scalar_lea.vmem [#allocation2], %s364
        $region78: #{conv1x1_bn_relu.1} parent=73 // pred_fallthru
          _
      $region74: #{conv1x1_bn_relu.1} parent=5 // pred_fallthru
        _
    $region6: #{conv1x1_bn_relu.1} parent=1 // loop_footer
      %s13 = sadd.s32 1, %s9
    $region7: #{conv1x1_bn_relu.1} parent=1 // loop_footer_branch
      %8 = sbr.rel target = $region3
    $region8: #{conv1x1_bn_relu.1} parent=1 // loop_exit
      _

</llo_original>
